<compile_context>
chip_gen: v7x
topology: tpu7x:2x2x1
jax: 0.10.0
libtpu: 0.0.40
codegen_flags: <defaults>
</compile_context>

<pallas_src>
import functools

import jax
import jax.numpy as jnp
from jax import lax
from jax.experimental import pallas as pl
from jax.experimental.pallas import tpu as pltpu


def _temporal_loss_kernel(logits_ref, labels_ref, out_ref,
                          carry_ref, ce_acc_ref, diff_acc_ref,
                          *, B, TB, TILES_PER_SPLIT):
    c = pl.program_id(0)          # batch-half index (megacore-parallel on v7x)
    i = pl.program_id(1)          # tile index inside the half (reduction axis)
    n_i = pl.num_programs(1)

    # Cast on load: HBM traffic stays at the model's native width (e.g. bf16).
    x = logits_ref[...].astype(jnp.float32)               # (TB, C_pad)
    labels = labels_ref[...]                               # (TB, 1) int32

    t = c * TILES_PER_SPLIT + i                            # un-clamped tile id
    row0 = t * TB
    local_rows = lax.broadcasted_iota(jnp.int32, (TB, 1), 0)
    row_ids = row0 + local_rows
    row_valid = row_ids < B                                # ragged / duplicated tiles

    @pl.when(i == 0)
    def _init():
        ce_acc_ref[...] = jnp.zeros_like(ce_acc_ref)
        diff_acc_ref[...] = jnp.zeros_like(diff_acc_ref)

    # ---- cross-entropy partial sum (VMEM (TB,1) vector accumulator) ----
    row_max = jnp.max(x, axis=-1, keepdims=True)
    shifted = x - row_max
    lse_s = jnp.log(jnp.sum(jnp.exp(shifted), axis=-1, keepdims=True))  # (TB,1)
    class_ids = lax.broadcasted_iota(jnp.int32, x.shape, 1)
    # fused one-hot pick: select + row-sum (no int->f32 convert, no multiply)
    picked_s = jnp.sum(jnp.where(class_ids == labels, shifted, 0.0),
                       axis=-1, keepdims=True)                           # (TB,1)
    # keep masks as true selects: invalid rows may hold NaN/Inf garbage
    ce_acc_ref[...] += jnp.where(row_valid, lse_s - picked_s, 0.0)

    # ---- temporal |diff| partial sum (VMEM (1,C_pad) vector accumulator) ----
    if B > 1:   # static, mirrors `if outputs.logits.size(0) > 1:`
        nxt = pltpu.roll(x, TB - 1, 0)                   # nxt[r] = x[(r+1) % TB]
        intra = jnp.abs(nxt - x)
        pair_valid = (local_rows < (TB - 1)) & ((row_ids + 1) < B)
        diff_acc_ref[...] += jnp.sum(jnp.where(pair_valid, intra, 0.0),
                                     axis=0, keepdims=True)

        # boundary pair: previous tile's last row vs this tile's first row
        # (row0 < B excludes the duplicated clamped tile of an odd tile count)
        @pl.when((i > 0) & (row0 < B))
        def _boundary():
            diff_acc_ref[...] += jnp.abs(x[0:1, :] - carry_ref[...])

        # carry this tile's last row for the next tile's boundary pair
        carry_ref[...] = x[TB - 1:TB, :]

    # single cross-lane reduce + store, once per half
    @pl.when(i == n_i - 1)
    def _finalize():
        ce_total = jnp.sum(ce_acc_ref[...])
        diff_total = jnp.sum(diff_acc_ref[...])
        lane = lax.broadcasted_iota(jnp.int32, (1, 8, 128), 2)
        out_ref[...] = jnp.where(lane == 0, ce_total,
                                 jnp.where(lane == 1, diff_total, 0.0))


def temporal_aware_loss(logits, labels, *, block_rows=4096):
    """logits: (B, C) float (any float dtype), labels: (B,) int -> scalar f32."""
    B, C = logits.shape
    labels2d = labels.reshape(B, 1).astype(jnp.int32)

    # Per-generation VMEM budget (v7x: 64 MiB phys -> 48 MiB scoped; v5e/v6e:
    # 128 MiB phys -> 96 MiB scoped). Fallback is safe everywhere.
    try:
        vmem_phys = int(pltpu.get_tpu_info().vmem_capacity_bytes)
    except Exception:
        vmem_phys = 64 * 1024 * 1024
    vmem_limit = int(min((vmem_phys * 3) // 4, 96 * 1024 * 1024))

    # Lane-pad the class axis to a multiple of 128 with a large *finite*
    # negative: exp(pad)==0, the label pick never selects pads, |diff|==0.
    C_pad = max(128, ((C + 127) // 128) * 128)
    if C_pad != C:
        logits_in = jnp.pad(logits, ((0, 0), (0, C_pad - C)), constant_values=-1e9)
    else:
        logits_in = logits

    # Size the tile by the f32 working set (several (TB,C_pad) f32 temporaries
    # plus the double-buffered native-dtype input), not by input bytes alone.
    f32_tile_cap = min(2 * 1024 * 1024, vmem_limit // 16)
    max_rows = max(8, (f32_tile_cap // (C_pad * 4)) // 8 * 8)
    tb = min(block_rows, max_rows, ((B + 7) // 8) * 8)
    tb = max(8, (tb // 8) * 8)                 # always a multiple of 8 sublanes

    n_tiles = -(-B // tb)
    num_splits = 2 if n_tiles >= 2 else 1      # feed both v7x TensorCores
    tiles_per_split = -(-n_tiles // num_splits)
    grid = (num_splits, tiles_per_split)

    # Clamp so a duplicated trailing tile (odd tile count) never DMAs fully
    # out of bounds; its contribution is masked in-kernel via row_ids >= B.
    def tile_idx(ci, ii):
        return (jnp.minimum(ci * tiles_per_split + ii, n_tiles - 1), 0)

    kernel = functools.partial(_temporal_loss_kernel, B=B, TB=tb,
                               TILES_PER_SPLIT=tiles_per_split)

    partials = pl.pallas_call(
        kernel,
        out_shape=jax.ShapeDtypeStruct((num_splits, 8, 128), jnp.float32),
        grid_spec=pltpu.PrefetchScalarGridSpec(
            num_scalar_prefetch=0,
            grid=grid,
            in_specs=[
                pl.BlockSpec((tb, C_pad), tile_idx),       # logits tile
                pl.BlockSpec((tb, 1), tile_idx),           # labels tile
            ],
            out_specs=pl.BlockSpec((1, 8, 128), lambda ci, ii: (ci, 0, 0)),
            scratch_shapes=[
                pltpu.VMEM((1, C_pad), jnp.float32),   # carry: prev tile's last row
                pltpu.VMEM((tb, 1), jnp.float32),      # CE partial (per-row)
                pltpu.VMEM((1, C_pad), jnp.float32),   # |diff| partial (per-column)
            ],
        ),
        compiler_params=pltpu.CompilerParams(
            # halves run on separate TCs (v7x); tiles within a half carry state
            dimension_semantics=("parallel", "arbitrary"),
            vmem_limit_bytes=vmem_limit,
        ),
    )(logits_in, labels2d)

    ce_sum = jnp.sum(partials[:, 0, 0])
    loss = ce_sum / jnp.float32(B)
    if B > 1:
        diff_sum = jnp.sum(partials[:, 0, 1])
        if num_splits == 2:
            # the single cross-half boundary pair, computed on 2 rows in XLA
            split_row = tiles_per_split * tb
            a = logits[split_row - 1].astype(jnp.float32)
            b = logits[split_row].astype(jnp.float32)
            diff_sum = diff_sum + jnp.sum(jnp.abs(b - a))
        loss = loss + jnp.float32(0.3) * diff_sum / jnp.float32((B - 1) * C)
    return loss


def _reference(logits, labels):
    # pure-JAX reference of the PyTorch module
    logits = logits.astype(jnp.float32)
    lse = jax.nn.logsumexp(logits, axis=-1)
    picked = jnp.take_along_axis(
        logits, labels[:, None].astype(jnp.int32), axis=-1)[:, 0]
    ce = jnp.mean(lse - picked)
    if logits.shape[0] > 1:
        ce = ce + 0.3 * jnp.mean(jnp.abs(logits[1:] - logits[:-1]))
    return ce


if __name__ == "__main__":
    key = jax.random.PRNGKey(0)
    k1, k2, k3, k4 = jax.random.split(key, 4)

    # small "temporal" batch of frame logits (single tile, single split)
    B, C = 8, 32
    logits = jax.random.normal(k1, (B, C), dtype=jnp.float32)
    labels = jax.random.randint(k2, (B,), 0, C, dtype=jnp.int32)

    loss = jax.block_until_ready(temporal_aware_loss(logits, labels))
    ref = _reference(logits, labels)
    assert jnp.allclose(loss, ref, rtol=1e-5, atol=1e-5), (loss, ref)

    # multi-tile, 2-way split, ragged last tile, odd tile count (duplicated
    # clamped tile), cross-half boundary pair, and in-kernel bf16 -> f32 cast
    B2, C2 = 20, 32
    logits2 = jax.random.normal(k3, (B2, C2), dtype=jnp.float32).astype(jnp.bfloat16)
    labels2 = jax.random.randint(k4, (B2,), 0, C2, dtype=jnp.int32)

    loss2 = jax.block_until_ready(
        temporal_aware_loss(logits2, labels2, block_rows=8))
    ref2 = _reference(logits2, labels2)
    assert jnp.allclose(loss2, ref2, rtol=1e-4, atol=1e-4), (loss2, ref2)

    print("KERNEL_OK")
</pallas_src>

<mosaic_0001>
module attributes {stable_mosaic.version = 11 : i64} {
  func.func @_temporal_loss_kernel(%arg0: i32, %arg1: i32, %arg2: memref<8x128xf32, #tpu.memory_space<vmem>>, %arg3: memref<8x1xi32, #tpu.memory_space<vmem>>, %arg4: memref<1x8x128xf32, #tpu.memory_space<vmem>>, %arg5: memref<1x128xf32, #tpu.memory_space<vmem>>, %arg6: memref<8x1xf32, #tpu.memory_space<vmem>>, %arg7: memref<1x128xf32, #tpu.memory_space<vmem>>) attributes {dimension_semantics = [#tpu.dimension_semantics<parallel>, #tpu.dimension_semantics<arbitrary>], iteration_bounds = array<i64: 1, 1>, scalar_prefetch = 0 : i64, scratch_operands = 3 : i64, tpu.core_type = #tpu.core_type<tc>, window_params = [{transform_indices = @transform_0, window_bounds = array<i64: 8, 128>}, {transform_indices = @transform_1, window_bounds = array<i64: 8, 1>}, {transform_indices = @transform_2, window_bounds = array<i64: 1, 8, 128>}]} {
    %c0 = arith.constant 0 : index
    %c0_0 = arith.constant 0 : index
    %0 = vector.load %arg2[%c0, %c0_0] : memref<8x128xf32, #tpu.memory_space<vmem>>, vector<8x128xf32>
    %c0_1 = arith.constant 0 : index
    %c0_2 = arith.constant 0 : index
    %1 = vector.load %arg3[%c0_1, %c0_2] : memref<8x1xi32, #tpu.memory_space<vmem>>, vector<8x1xi32>
    %c1_i32 = arith.constant 1 : i32
    %2 = arith.muli %arg0, %c1_i32 : i32
    %3 = arith.addi %2, %arg1 : i32
    %c8_i32 = arith.constant 8 : i32
    %4 = arith.muli %3, %c8_i32 : i32
    %5 = tpu.iota {dimensions = array<i32: 0>} : vector<8x1xi32>
    %6 = vector.broadcast %4 : i32 to vector<8x1xi32>
    %7 = arith.addi %6, %5 : vector<8x1xi32>
    %c8_i32_3 = arith.constant 8 : i32
    %8 = vector.broadcast %c8_i32_3 : i32 to vector<8x1xi32>
    %9 = arith.cmpi slt, %7, %8 : vector<8x1xi32>
    %c0_i32 = arith.constant 0 : i32
    %10 = arith.cmpi eq, %arg1, %c0_i32 : i32
    %11 = arith.extui %10 : i1 to i32
    %c0_i32_4 = arith.constant 0 : i32
    %12 = arith.cmpi ne, %11, %c0_i32_4 : i32
    scf.if %12 {
      %cst_29 = arith.constant 0.000000e+00 : f32
      %63 = vector.broadcast %cst_29 : f32 to vector<8x1xf32>
      %c0_30 = arith.constant 0 : index
      %c0_31 = arith.constant 0 : index
      %64 = vector.load %arg6[%c0_30, %c0_31] : memref<8x1xf32, #tpu.memory_space<vmem>>, vector<8x1xf32>
      tpu.vector_store %arg6[%c0_30, %c0_31], %63 {strides = array<i32>} : memref<8x1xf32, #tpu.memory_space<vmem>>, vector<8x1xf32>,
      %cst_32 = arith.constant 0.000000e+00 : f32
      %65 = vector.broadcast %cst_32 : f32 to vector<1x128xf32>
      %c0_33 = arith.constant 0 : index
      %c0_34 = arith.constant 0 : index
      %66 = vector.load %arg7[%c0_33, %c0_34] : memref<1x128xf32, #tpu.memory_space<vmem>>, vector<1x128xf32>
      tpu.vector_store %arg7[%c0_33, %c0_34], %65 {strides = array<i32>} : memref<1x128xf32, #tpu.memory_space<vmem>>, vector<1x128xf32>,
    } else {
    }
    %cst = arith.constant dense<0xFF800000> : vector<8xf32>
    %13 = vector.multi_reduction <maximumf>, %0, %cst [1] : vector<8x128xf32> to vector<8xf32>
    %14 = vector.shape_cast %13 : vector<8xf32> to vector<8x1xf32>
    %15 = vector.broadcast %14 : vector<8x1xf32> to vector<8x128xf32>
    %16 = arith.subf %0, %15 : vector<8x128xf32>
    %17 = math.exp %16 : vector<8x128xf32>
    %cst_5 = arith.constant dense<0.000000e+00> : vector<8xf32>
    %18 = vector.multi_reduction <add>, %17, %cst_5 [1] : vector<8x128xf32> to vector<8xf32>
    %19 = vector.shape_cast %18 : vector<8xf32> to vector<8x1xf32>
    %20 = math.log %19 : vector<8x1xf32>
    %21 = tpu.iota {dimensions = array<i32: 1>} : vector<8x128xi32>
    %22 = vector.broadcast %1 : vector<8x1xi32> to vector<8x128xi32>
    %23 = arith.cmpi eq, %21, %22 : vector<8x128xi32>
    %cst_6 = arith.constant 0.000000e+00 : f32
    %24 = vector.broadcast %cst_6 : f32 to vector<8x128xf32>
    %25 = arith.select %23, %16, %24 : vector<8x128xi1>, vector<8x128xf32>
    %cst_7 = arith.constant dense<0.000000e+00> : vector<8xf32>
    %26 = vector.multi_reduction <add>, %25, %cst_7 [1] : vector<8x128xf32> to vector<8xf32>
    %27 = vector.shape_cast %26 : vector<8xf32> to vector<8x1xf32>
    %c0_8 = arith.constant 0 : index
    %c0_9 = arith.constant 0 : index
    %28 = vector.load %arg6[%c0_8, %c0_9] : memref<8x1xf32, #tpu.memory_space<vmem>>, vector<8x1xf32>
    %29 = arith.subf %20, %27 : vector<8x1xf32>
    %cst_10 = arith.constant 0.000000e+00 : f32
    %30 = vector.broadcast %cst_10 : f32 to vector<8x1xf32>
    %31 = arith.select %9, %29, %30 : vector<8x1xi1>, vector<8x1xf32>
    %32 = arith.addf %28, %31 : vector<8x1xf32>
    %c0_11 = arith.constant 0 : index
    %c0_12 = arith.constant 0 : index
    %33 = vector.load %arg6[%c0_11, %c0_12] : memref<8x1xf32, #tpu.memory_space<vmem>>, vector<8x1xf32>
    tpu.vector_store %arg6[%c0_11, %c0_12], %32 {strides = array<i32>} : memref<8x1xf32, #tpu.memory_space<vmem>>, vector<8x1xf32>,
    %c7_i32 = arith.constant 7 : i32
    %34 = tpu.dynamic_rotate %0 by %c7_i32 dim 0 : vector<8x128xf32>, i32 -> vector<8x128xf32>
    %35 = arith.subf %34, %0 : vector<8x128xf32>
    %36 = math.absf %35 : vector<8x128xf32>
    %c7_i32_13 = arith.constant 7 : i32
    %37 = vector.broadcast %c7_i32_13 : i32 to vector<8x1xi32>
    %38 = arith.cmpi slt, %5, %37 : vector<8x1xi32>
    %c1_i32_14 = arith.constant 1 : i32
    %39 = vector.broadcast %c1_i32_14 : i32 to vector<8x1xi32>
    %40 = arith.addi %7, %39 : vector<8x1xi32>
    %c8_i32_15 = arith.constant 8 : i32
    %41 = vector.broadcast %c8_i32_15 : i32 to vector<8x1xi32>
    %42 = arith.cmpi slt, %40, %41 : vector<8x1xi32>
    %43 = arith.andi %38, %42 : vector<8x1xi1>
    %c0_16 = arith.constant 0 : index
    %c0_17 = arith.constant 0 : index
    %44 = vector.load %arg7[%c0_16, %c0_17] : memref<1x128xf32, #tpu.memory_space<vmem>>, vector<1x128xf32>
    %cst_18 = arith.constant 0.000000e+00 : f32
    %45 = vector.shape_cast %43 : vector<8x1xi1> to vector<8x1xi1>
    %46 = vector.broadcast %45 : vector<8x1xi1> to vector<8x128xi1>
    %47 = vector.broadcast %cst_18 : f32 to vector<8x128xf32>
    %48 = arith.select %46, %36, %47 : vector<8x128xi1>, vector<8x128xf32>
    %cst_19 = arith.constant dense<0.000000e+00> : vector<128xf32>
    %49 = vector.multi_reduction <add>, %48, %cst_19 [0] : vector<8x128xf32> to vector<128xf32>
    %50 = vector.shape_cast %49 : vector<128xf32> to vector<1x128xf32>
    %51 = arith.addf %44, %50 : vector<1x128xf32>
    %c0_20 = arith.constant 0 : index
    %c0_21 = arith.constant 0 : index
    %52 = vector.load %arg7[%c0_20, %c0_21] : memref<1x128xf32, #tpu.memory_space<vmem>>, vector<1x128xf32>
    tpu.vector_store %arg7[%c0_20, %c0_21], %51 {strides = array<i32>} : memref<1x128xf32, #tpu.memory_space<vmem>>, vector<1x128xf32>,
    %c0_i32_22 = arith.constant 0 : i32
    %53 = arith.cmpi sgt, %arg1, %c0_i32_22 : i32
    %c8_i32_23 = arith.constant 8 : i32
    %54 = arith.cmpi slt, %4, %c8_i32_23 : i32
    %55 = arith.andi %53, %54 : i1
    %56 = arith.extui %55 : i1 to i32
    %c0_i32_24 = arith.constant 0 : i32
    %57 = arith.cmpi ne, %56, %c0_i32_24 : i32
    scf.if %57 {
      %c0_29 = arith.constant 0 : index
      %c0_30 = arith.constant 0 : index
      %63 = vector.load %arg7[%c0_29, %c0_30] : memref<1x128xf32, #tpu.memory_space<vmem>>, vector<1x128xf32>
      %64 = vector.extract_strided_slice %0 {offsets = [0, 0], sizes = [1, 128], strides = [1, 1]} : vector<8x128xf32> to vector<1x128xf32>
      %c0_31 = arith.constant 0 : index
      %c0_32 = arith.constant 0 : index
      %65 = vector.load %arg5[%c0_31, %c0_32] : memref<1x128xf32, #tpu.memory_space<vmem>>, vector<1x128xf32>
      %66 = arith.subf %64, %65 : vector<1x128xf32>
      %67 = math.absf %66 : vector<1x128xf32>
      %68 = arith.addf %63, %67 : vector<1x128xf32>
      %c0_33 = arith.constant 0 : index
      %c0_34 = arith.constant 0 : index
      %69 = vector.load %arg7[%c0_33, %c0_34] : memref<1x128xf32, #tpu.memory_space<vmem>>, vector<1x128xf32>
      tpu.vector_store %arg7[%c0_33, %c0_34], %68 {strides = array<i32>} : memref<1x128xf32, #tpu.memory_space<vmem>>, vector<1x128xf32>,
    } else {
    }
    %58 = vector.extract_strided_slice %0 {offsets = [7, 0], sizes = [1, 128], strides = [1, 1]} : vector<8x128xf32> to vector<1x128xf32>
    %c0_25 = arith.constant 0 : index
    %c0_26 = arith.constant 0 : index
    %59 = vector.load %arg5[%c0_25, %c0_26] : memref<1x128xf32, #tpu.memory_space<vmem>>, vector<1x128xf32>
    tpu.vector_store %arg5[%c0_25, %c0_26], %58 {strides = array<i32>} : memref<1x128xf32, #tpu.memory_space<vmem>>, vector<1x128xf32>,
    %c0_i32_27 = arith.constant 0 : i32
    %60 = arith.cmpi eq, %arg1, %c0_i32_27 : i32
    %61 = arith.extui %60 : i1 to i32
    %c0_i32_28 = arith.constant 0 : i32
    %62 = arith.cmpi ne, %61, %c0_i32_28 : i32
    scf.if %62 {
      %c0_29 = arith.constant 0 : index
      %c0_30 = arith.constant 0 : index
      %63 = vector.load %arg6[%c0_29, %c0_30] : memref<8x1xf32, #tpu.memory_space<vmem>>, vector<8x1xf32>
      %64 = vector.shape_cast %63 : vector<8x1xf32> to vector<1x8x1xf32>
      %cst_31 = arith.constant dense<0.000000e+00> : vector<1xf32>
      %65 = vector.multi_reduction <add>, %64, %cst_31 [1, 2] : vector<1x8x1xf32> to vector<1xf32>
      %66 = vector.shape_cast %65 : vector<1xf32> to vector<1x1x1xf32>
      %67 = vector.extract %66[0, 0, 0] : f32 from vector<1x1x1xf32>
      %c0_32 = arith.constant 0 : index
      %c0_33 = arith.constant 0 : index
      %68 = vector.load %arg7[%c0_32, %c0_33] : memref<1x128xf32, #tpu.memory_space<vmem>>, vector<1x128xf32>
      %69 = vector.shape_cast %68 : vector<1x128xf32> to vector<1x1x128xf32>
      %cst_34 = arith.constant dense<0.000000e+00> : vector<1xf32>
      %70 = vector.multi_reduction <add>, %69, %cst_34 [1, 2] : vector<1x1x128xf32> to vector<1xf32>
      %71 = vector.shape_cast %70 : vector<1xf32> to vector<1x1x1xf32>
      %72 = vector.extract %71[0, 0, 0] : f32 from vector<1x1x1xf32>
      %73 = tpu.iota {dimensions = array<i32: 2>} : vector<1x8x128xi32>
      %c0_i32_35 = arith.constant 0 : i32
      %74 = vector.broadcast %c0_i32_35 : i32 to vector<1x8x128xi32>
      %75 = arith.cmpi eq, %73, %74 : vector<1x8x128xi32>
      %c1_i32_36 = arith.constant 1 : i32
      %76 = vector.broadcast %c1_i32_36 : i32 to vector<1x8x128xi32>
      %77 = arith.cmpi eq, %73, %76 : vector<1x8x128xi32>
      %cst_37 = arith.constant 0.000000e+00 : f32
      %78 = vector.broadcast %72 : f32 to vector<1x8x128xf32>
      %79 = vector.broadcast %cst_37 : f32 to vector<1x8x128xf32>
      %80 = arith.select %77, %78, %79 : vector<1x8x128xi1>, vector<1x8x128xf32>
      %81 = vector.broadcast %67 : f32 to vector<1x8x128xf32>
      %82 = arith.select %75, %81, %80 : vector<1x8x128xi1>, vector<1x8x128xf32>
      %c0_38 = arith.constant 0 : index
      %c0_39 = arith.constant 0 : index
      %c0_40 = arith.constant 0 : index
      %83 = vector.load %arg4[%c0_38, %c0_39, %c0_40] : memref<1x8x128xf32, #tpu.memory_space<vmem>>, vector<1x8x128xf32>
      tpu.vector_store %arg4[%c0_38, %c0_39, %c0_40], %82 {strides = array<i32>} : memref<1x8x128xf32, #tpu.memory_space<vmem>>, vector<1x8x128xf32>,
    } else {
    }
    return
  }
  func.func @transform_0(%arg0: i32, %arg1: i32) -> (i32, i32) {
    %c1_i32 = arith.constant 1 : i32
    %0 = arith.muli %arg0, %c1_i32 : i32
    %1 = arith.addi %0, %arg1 : i32
    %c0_i32 = arith.constant 0 : i32
    %2 = arith.minsi %1, %c0_i32 : i32
    %c0_i32_0 = arith.constant 0 : i32
    %c0_i32_1 = arith.constant 0 : i32
    return %2, %c0_i32_0 : i32, i32
  }
  func.func @transform_1(%arg0: i32, %arg1: i32) -> (i32, i32) {
    %c1_i32 = arith.constant 1 : i32
    %0 = arith.muli %arg0, %c1_i32 : i32
    %1 = arith.addi %0, %arg1 : i32
    %c0_i32 = arith.constant 0 : i32
    %2 = arith.minsi %1, %c0_i32 : i32
    %c0_i32_0 = arith.constant 0 : i32
    %c0_i32_1 = arith.constant 0 : i32
    return %2, %c0_i32_0 : i32, i32
  }
  func.func @transform_2(%arg0: i32, %arg1: i32) -> (i32, i32, i32) {
    %c0_i32 = arith.constant 0 : i32
    %c0_i32_0 = arith.constant 0 : i32
    %c0_i32_1 = arith.constant 0 : i32
    return %arg0, %c0_i32, %c0_i32_0 : i32, i32, i32
  }
}

</mosaic_0001>

<llo_original>
// kernel: tpu_custom_call.1
$region0: #{tpu_custom_call.1}
  #allocation0 [shape = 'u32[]', space=smem, size = 0x4, offset = 0x4, fixed_abs, tag = 'smem constant byte address 0x4 - core index']
  #allocation1 [shape = 'u32[144,128]{1,0:T(1,128)}', space=vmem, size = 0x12000, scoped, tag = 'internal scratch']
  #allocation2 [shape = 'f32[1,128]{1,0:T(1,128)}', space=vmem, size = 0x200, scoped, tag = 'scratch operand']
  #allocation3 [shape = 'f32[8,1]{1,0:T(8,128)}', space=vmem, size = 0x1000, scoped, tag = 'scratch operand']
  #allocation4 [shape = 'f32[1,128]{1,0:T(1,128)}', space=vmem, size = 0x200, scoped, tag = 'scratch operand']
  %s0 = inlined_call_operand.vmem [shape: f32[8,128], index: 0, kind: input, shape index: {}]
  %s1 = inlined_call_operand.vmem [shape: s32[8,1], index: 1, kind: input, shape index: {}]
  %s2 = inlined_call_operand.hbm [shape: f32[1,8,128], index: 2, kind: output, shape index: {}]
  %s3 = sld [smem:[#allocation0]]
  $region30: #{tpu_custom_call.1} parent=0
    _
  %s5 = ssub.s32 1, %s3
  %s6 = scalar_select 0, %s5, %s3
  $region1: #{tpu_custom_call.1} parent=0
    #allocation5 [shape = 'u8[4096]{0}', space=vmem, size = 0x1000, scoped, tag = 'output window, operand 0, single buffered']
    #allocation6 [shape = 's32[1]{0}', space=sflag, size = 0x4, scoped, tag = 'scoped memory for tpu_custom_call.1']
    %7 = vsyncpa [#allocation6], 0
    // Predicated region
    $region2: #{tpu_custom_call.1} parent=1 // pred_check
      _
    $region3: #{tpu_custom_call.1} parent=1 // pred_check_branch
      %9 = sbr.rel (0) target = $region5
    $region4: #{tpu_custom_call.1} parent=1 // pred_region
      %s10 = sadd.s32 0, 0
      %p11 = scmp.lt.s32.totalorder %s10, 0
      %s12 = scalar_select %p11, %s10, 0
      %p13 = scmp.lt.s32.totalorder %s12, 0
      %s14 = scalar_select %p13, %s12, 0
      %s15 = smul.addr %s14, 8
      %s16 = scalar_lea.vmem %s0, %s15
      %s17 = sadd.s32 0, 0
      %p18 = scmp.lt.s32.totalorder %s17, 0
      %s19 = scalar_select %p18, %s17, 0
    $region5: #{tpu_custom_call.1} parent=1 // pred_fallthru
      _
    // Predicated region
    $region6: #{tpu_custom_call.1} parent=1 // pred_check
      _
    $region7: #{tpu_custom_call.1} parent=1 // pred_check_branch
      %21 = sbr.rel (0) target = $region9
    $region8: #{tpu_custom_call.1} parent=1 // pred_region
      %s22 = sadd.s32 0, 0
      %p23 = scmp.lt.s32.totalorder %s22, 0
      %s24 = scalar_select %p23, %s22, 0
      %p25 = scmp.lt.s32.totalorder %s24, 0
      %s26 = scalar_select %p25, %s24, 0
      %s27 = smul.addr %s26, 8
      %s28 = scalar_lea.vmem %s1, %s27
      %s29 = sadd.s32 0, 0
      %p30 = scmp.lt.s32.totalorder %s29, 0
      %s31 = scalar_select %p30, %s29, 0
    $region9: #{tpu_custom_call.1} parent=1 // pred_fallthru
      _
    %s32 = sadd.s32 0, 0
    %p33 = scmp.lt.s32.totalorder %s32, 0
    %s34 = scalar_select %p33, %s32, 0
    %p35 = scmp.lt.s32.totalorder %s34, 0
    %s36 = scalar_select %p35, %s34, 0
    %s37 = smul.addr %s36, 8
    %s38 = scalar_lea.vmem %s0, %s37
    %s39 = sadd.s32 0, 0
    %p40 = scmp.lt.s32.totalorder %s39, 0
    %s41 = scalar_select %p40, %s39, 0
    %p42 = scmp.lt.s32.totalorder %s41, 0
    %s43 = scalar_select %p42, %s41, 0
    %s44 = smul.addr %s43, 8
    %s45 = scalar_lea.vmem %s1, %s44
    %s46 = sadd.s32 0, 0
    %p47 = scmp.lt.s32.totalorder %s46, 0
    %s48 = scalar_select %p47, %s46, 0
    %p49 = scmp.lt.s32.totalorder %s48, 0
    %s50 = scalar_select %p49, %s48, 0
    %s51 = smul.addr %s50, 8
    %s52 = scalar_lea.vmem %s0, %s51
    %s53 = sadd.s32 0, 0
    %p54 = scmp.lt.s32.totalorder %s53, 0
    %s55 = scalar_select %p54, %s53, 0
    %s56 = sadd.s32 0, 0
    %p57 = scmp.lt.s32.totalorder %s56, 0
    %s58 = scalar_select %p57, %s56, 0
    %p59 = scmp.lt.s32.totalorder %s58, 0
    %s60 = scalar_select %p59, %s58, 0
    %s61 = smul.addr %s60, 8
    %s62 = scalar_lea.vmem %s1, %s61
    %s63 = sadd.s32 0, 0
    %p64 = scmp.lt.s32.totalorder %s63, 0
    %s65 = scalar_select %p64, %s63, 0
    %v66 = vld [vmem:[%s52] sm:$0xff]
    %v67 = vld [vmem:[%s62] sm:$0xff]
    %s68 = sadd.s32 0, 0
    %s69 = smul.u32 %s68, 8
    %v70 = vlaneseq
    %v71 = vshrl.u32 %v70, 7
    %v72 = vstv %s69
    %v73 = vadd.s32 %v72, %v71
    %vm74 = vcmp.lt.s32.totalorder %v73, 8
    %p75 = scmp.eq.s32.totalorder 0, 0
    // Predicated region
    $region10: #{tpu_custom_call.1} parent=1 // pred_check
      %p76 = pneg %p75
    $region11: #{tpu_custom_call.1} parent=1 // pred_check_branch
      %78 = sbr.rel (%p76) target = $region13
    $region12: #{tpu_custom_call.1} parent=1 // pred_region
      %vm79 = vcmask 7168
      %80 = vst.msk [vmem:[#allocation3] sm:$0xff] %vm79, 0.0
      %81 = vst [vmem:[#allocation4] sm:$0x1] 0.0
    $region13: #{tpu_custom_call.1} parent=1 // pred_fallthru
      _
    %82 = vmax.xlane.f32.xlu0 %v66
    %v83 = vpop.xlane.xlu0 %82
    %v84 = vsub.f32 %v66, %v83
    %v85 = vmul.f32 %v84, 1.442695
    %v86 = vpow.pop %v85
    %87 = vadd.xlane.f32.xlu0 %v86
    %v88 = vpop.xlane.xlu0 %87
    %v89 = vlog2.pop %v88
    %v90 = vmul.f32 %v89, 0.6931472
    %v91 = vlaneseq
    %v92 = vand.u32 %v91, 127
    %93 = vset.pattern.permute.xlu0 0
    %94 = vperm.xlu0 %93, %v67
    %v95 = vpop.permute.xlu0 %94
    %vm96 = vcmp.eq.s32.totalorder %v92, %v95
    %v97 = vsel %vm96, %v84, 0.0
    %98 = vadd.xlane.f32.xlu0 %v97
    %v99 = vpop.xlane.xlu0 %98
    %v100 = vld [vmem:[#allocation3] sm:$0xff]
    %v101 = vsub.f32 %v90, %v99
    %v102 = vsel %vm74, %v101, 0.0
    %v103 = vadd.f32 %v100, %v102
    %vm104 = vcmask 7168
    %105 = vst.msk [vmem:[#allocation3] sm:$0xff] %vm104, %v103
    %v106 = vrot.slane %v66, 1
    %v107 = vsub.f32 %v106, %v66
    %v108 = vand.u32 2147483647, %v107
    %vm109 = vcmp.lt.s32.totalorder %v71, 7
    %v110 = vadd.s32 %v73, 1
    %vm111 = vcmp.lt.s32.totalorder %v110, 8
    %vm112 = vmand %vm109, %vm111
    %v113 = vld [vmem:[#allocation4] sm:$0x1]
    %v114 = vsel %vm112, 1, 0
    %vm115 = vcmp.eq.s32.totalorder %v114, 1
    %v116 = vsel %vm115, %v108, 0.0
    %v117 = vrot.slane %v116, 4
    %v118 = vadd.f32 %v116, %v117
    %v119 = vrot.slane %v118, 2
    %v120 = vadd.f32 %v118, %v119
    %v121 = vrot.slane %v120, 1
    %v122 = vadd.f32 %v120, %v121
    %v123 = vadd.f32 %v113, %v122
    %124 = vst [vmem:[#allocation4] sm:$0x1] %v123
    %p125 = scmp.gt.s32.totalorder 0, 0
    %p126 = scmp.lt.s32.totalorder %s69, 8
    %p127 = pnand %p125, %p126
    %p128 = pneg %p127
    // Predicated region
    $region14: #{tpu_custom_call.1} parent=1 // pred_check
      _
    $region15: #{tpu_custom_call.1} parent=1 // pred_check_branch
      %130 = sbr.rel (%p127) target = $region17
    $region16: #{tpu_custom_call.1} parent=1 // pred_region
      %v131 = vld [vmem:[#allocation4] sm:$0x1]
      %v132 = vld [vmem:[#allocation2] sm:$0x1]
      %v133 = vsub.f32 %v66, %v132
      %v134 = vand.u32 2147483647, %v133
      %v135 = vadd.f32 %v131, %v134
      %136 = vst [vmem:[#allocation4] sm:$0x1] %v135
    $region17: #{tpu_custom_call.1} parent=1 // pred_fallthru
      _
    %137 = vst [vmem:[#allocation2 - $0x7] sm:$0x80] %v66
    // Predicated region
    $region18: #{tpu_custom_call.1} parent=1 // pred_check
      %p138 = pneg %p75
    $region19: #{tpu_custom_call.1} parent=1 // pred_check_branch
      %140 = sbr.rel (%p138) target = $region21
    $region20: #{tpu_custom_call.1} parent=1 // pred_region
      %v141 = vld [vmem:[#allocation3] sm:$0xff]
      %v142 = vsel %vm104, %v141, 0.0
      %143 = vadd.xlane.f32.xlu0 %v142
      %v144 = vpop.xlane.xlu0 %143
      %v145 = vrot.slane %v144, 4
      %v146 = vadd.f32 %v144, %v145
      %v147 = vrot.slane %v146, 2
      %v148 = vadd.f32 %v146, %v147
      %v149 = vrot.slane %v148, 1
      %v150 = vadd.f32 %v148, %v149
      %s151 = vtos %v150
      %v152 = vld [vmem:[#allocation4] sm:$0x1]
      %vm153 = vcmask 1040384
      %v154 = vsel %vm153, %v152, 0.0
      %155 = vadd.xlane.f32.xlu0 %v154
      %v156 = vpop.xlane.xlu0 %155
      %v157 = vrot.slane %v156, 4
      %v158 = vadd.f32 %v156, %v157
      %v159 = vrot.slane %v158, 2
      %v160 = vadd.f32 %v158, %v159
      %v161 = vrot.slane %v160, 1
      %v162 = vadd.f32 %v160, %v161
      %s163 = vtos %v162
      %vm164 = vcmp.eq.s32.totalorder %v92, 0
      %vm165 = vcmp.eq.s32.totalorder %v92, 1
      %v166 = vstv %s163
      %v167 = vsel %vm165, %v166, 0.0
      %v168 = vstv %s151
      %v169 = vsel %vm164, %v168, %v167
      %170 = vst [vmem:[#allocation5] sm:$0xff] %v169
    $region21: #{tpu_custom_call.1} parent=1 // pred_fallthru
      _
    // Predicated region
    $region22: #{tpu_custom_call.1} parent=1 // pred_check
      _
    $region23: #{tpu_custom_call.1} parent=1 // pred_check_branch
      %172 = sbr.rel (0) target = $region25
    $region24: #{tpu_custom_call.1} parent=1 // pred_region
      %s174 = ssub.s32 128, 128
      %175 = vsyncadd [#allocation6], %s174
      %s177 = sshll.u32 [#allocation5], 4
      %s178 = int_to_ptr.vmem [resolvable:$true] %s177
      %180 = dma.vmem_to_hbm [thread:$0]  %s178, 128, %s2, [#allocation6]
    $region25: #{tpu_custom_call.1} parent=1 // pred_fallthru
      _
    // Predicated region
    $region26: #{tpu_custom_call.1} parent=1 // pred_check
      _
    $region27: #{tpu_custom_call.1} parent=1 // pred_check_branch
      %182 = sbr.rel (0) target = $region29
    $region28: #{tpu_custom_call.1} parent=1 // pred_region
      %183 = dma.done [#allocation6], 128
    $region29: #{tpu_custom_call.1} parent=1 // pred_fallthru
      _
    %184 = vsyncpa [#allocation6], 1

</llo_original>
